<compile_context>
chip_gen: v5e
topology: v5e:2x2
jax: 0.10.0
libtpu: 0.0.40
codegen_flags: <defaults>
</compile_context>

<pallas_src>
import numpy as np
import jax
import jax.numpy as jnp
from jax.experimental import pallas as pl
from jax.experimental.pallas import tpu as pltpu

# ----------------------------- config -----------------------------
PATCH = 4                 # synthetic backbone patch size -> masks at 1/4 res
EMBED_DIM = 32
NUM_CLASSES = 8
NUM_QUERIES = 16
TEST_TOPK = 100           # same as module default (<= NUM_QUERIES*NUM_CLASSES)
SIZE_DIVISIBILITY = 32
CB_SLAB = 128             # lane-aligned sub-slab width for the cls|box head
PIXEL_MEAN = np.array([123.675, 116.28, 103.53], dtype=np.float32)
PIXEL_STD = np.array([58.395, 57.12, 57.375], dtype=np.float32)


# ------------------------- normalize kernel -------------------------
def _normalize_kernel(x_ref, a_ref, b_ref, mask_ref, o_ref):
    # (255*x - mean)/std == x*a + b with a = 255/std, b = -mean/std, then the
    # ImageList zero-padding is applied (normalize-then-pad-0 semantics).
    m = mask_ref[0, 0]                                   # (tile_rows, 128)
    for c in range(x_ref.shape[1]):
        o_ref[0, c] = (x_ref[0, c] * a_ref[c] + b_ref[c]) * m


def _pick_row_tile(rows, cap=2048):
    # rows is a multiple of 8 (Hp*Wp is a multiple of 1024); pick the largest
    # divisor <= cap so double-buffered in+mask+out blocks stay well under the
    # v7x default scoped VMEM on realistic image sizes.
    best = 8
    for d in range(8, min(rows, cap) + 1, 8):
        if rows % d == 0:
            best = d
    return best


def normalize_images(flat, mask, a, b):
    """flat: (B, 3, HW//128, 128) raw padded pixels; mask: (B, 1, HW//128, 128)
    validity; a/b: (3, 128) per-channel affine rows.  Returns normalized."""
    bsz, c, rows, lanes = flat.shape
    tr = _pick_row_tile(rows)
    return pl.pallas_call(
        _normalize_kernel,
        out_shape=jax.ShapeDtypeStruct(flat.shape, jnp.float32),
        grid=(bsz, rows // tr),
        in_specs=[
            pl.BlockSpec((1, c, tr, lanes), lambda i, j: (i, 0, j, 0)),
            pl.BlockSpec((c, lanes), lambda i, j: (0, 0)),
            pl.BlockSpec((c, lanes), lambda i, j: (0, 0)),
            pl.BlockSpec((1, 1, tr, lanes), lambda i, j: (i, 0, j, 0)),
        ],
        out_specs=pl.BlockSpec((1, c, tr, lanes), lambda i, j: (i, 0, j, 0)),
        compiler_params=pltpu.CompilerParams(
            dimension_semantics=("parallel", "parallel")),
    )(flat, a, b, mask)


# --------------------------- fused head -----------------------------
def _make_head_kernel(t_real, ncb):
    def kernel(patch_ref, w_pe_ref, b_pe_ref, q_emb_ref, w_cbm_ref, b_cbm_ref,
               o_ref):
        patches = patch_ref[0]                                     # (T, C*P*P)
        tokens = jnp.dot(patches, w_pe_ref[...],
                         preferred_element_type=jnp.float32) + b_pe_ref[...]
        feat = jnp.mean(tokens, axis=0, keepdims=True)             # (1, D)
        q = q_emb_ref[...] + feat                                  # (Q, D)

        # cls|box|mask-embed heads fused into ONE matmul (shared tiny LHS)
        cbm = jnp.dot(q, w_cbm_ref[...],
                      preferred_element_type=jnp.float32) + b_cbm_ref[...]
        cb = cbm[:, :CB_SLAB]                                      # (Q, 128)
        mask_embed = cbm[:, CB_SLAB:]                              # (Q, D)
        col = jax.lax.broadcasted_iota(jnp.int32, cb.shape, 1)
        cb = jnp.where((col >= NUM_CLASSES) & (col < ncb),
                       jax.nn.sigmoid(cb), cb)                     # sigmoid box

        # contraction on the last dim of both operands (no tokens.T)
        masks = jax.lax.dot_general(
            mask_embed, tokens, (((1,), (1,)), ((), ())),
            preferred_element_type=jnp.float32)                    # (Q, T)

        # two direct lane-aligned stores, no in-kernel concatenate
        o_ref[0, :, 0:CB_SLAB] = cb
        o_ref[0, :, CB_SLAB:CB_SLAB + t_real] = masks
    return kernel


def fused_head(patches, params):
    """patches: (B, T, 3*P*P) -> (pred_logits, pred_mask_logits, pred_boxes)."""
    b, t, cpp = patches.shape
    d = EMBED_DIM
    ncb = NUM_CLASSES + 4
    slab = CB_SLAB + ((t + 127) // 128) * 128          # lane-dense output slab
    # TODO(synk): for real-sized feature maps tile T with a grid axis
    # (accumulate the mean and the mask dot over T-chunks) to respect v7x VMEM.
    out = pl.pallas_call(
        _make_head_kernel(t, ncb),
        out_shape=jax.ShapeDtypeStruct((b, NUM_QUERIES, slab), jnp.float32),
        grid=(b,),
        in_specs=[
            pl.BlockSpec((1, t, cpp), lambda i: (i, 0, 0)),
            pl.BlockSpec((cpp, d), lambda i: (0, 0)),
            pl.BlockSpec((1, d), lambda i: (0, 0)),
            pl.BlockSpec((NUM_QUERIES, d), lambda i: (0, 0)),
            pl.BlockSpec((d, CB_SLAB + d), lambda i: (0, 0)),
            pl.BlockSpec((1, CB_SLAB + d), lambda i: (0, 0)),
        ],
        out_specs=pl.BlockSpec((1, NUM_QUERIES, slab), lambda i: (i, 0, 0)),
        compiler_params=pltpu.CompilerParams(
            dimension_semantics=("parallel",)),
    )(patches, params["w_patch"], params["b_patch"], params["query_embed"],
      params["w_cbm"], params["b_cbm"])
    logits = out[:, :, :NUM_CLASSES]
    boxes = out[:, :, NUM_CLASSES:ncb]
    masks = out[:, :, CB_SLAB:CB_SLAB + t]
    return logits, masks, boxes


# ------------------ fused (precomposed) resize + score ------------------
def _bilinear_matrix(out_size, in_size):
    """Row-interpolation matrix matching F.interpolate(mode='bilinear',
    align_corners=False)."""
    out_size = int(out_size)
    in_size = int(in_size)
    scale = in_size / out_size
    i = np.arange(out_size, dtype=np.float64)
    src = np.maximum((i + 0.5) * scale - 0.5, 0.0)
    i0 = np.minimum(np.floor(src).astype(np.int64), in_size - 1)
    i1 = np.minimum(i0 + 1, in_size - 1)
    frac = src - i0
    mat = np.zeros((out_size, in_size), dtype=np.float32)
    rows = np.arange(out_size)
    np.add.at(mat, (rows, i0), (1.0 - frac).astype(np.float32))
    np.add.at(mat, (rows, i1), frac.astype(np.float32))
    return mat


def _composed_resize_matrices(hm, wm, pad_h, pad_w, image_size, height, width):
    """Precompose quarter-res -> padded -> crop -> (height,width) bilinear
    operators (the crop is a row/col selection of the first operator).
    A_w^T is zero-padded to a lane-dense 128-multiple width."""
    a_h = _bilinear_matrix(height, image_size[0]) @ \
        _bilinear_matrix(pad_h, hm)[:image_size[0], :]            # (height, hm)
    a_w = _bilinear_matrix(width, image_size[1]) @ \
        _bilinear_matrix(pad_w, wm)[:image_size[1], :]            # (width, wm)
    wpad = ((width + 127) // 128) * 128
    a_wt = np.zeros((wm, wpad), np.float32)
    a_wt[:, :width] = a_w.T
    return a_h.astype(np.float32), a_wt


def _make_resize_score_kernel(g, hm):
    def kernel(x_ref, ah_ref, awt_ref, bin_ref, score_ref):
        ah = ah_ref[...]                                          # (out_h, hm)
        # one batched first-stage matmul for all g masks in this block
        t = jnp.dot(x_ref[...], awt_ref[...],
                    preferred_element_type=jnp.float32)           # (g*hm, wpad)
        for i in range(g):
            ti = t[i * hm:(i + 1) * hm, :]                        # (hm, wpad)
            m = jnp.dot(ah, ti, preferred_element_type=jnp.float32)
            binm = (m > 0.0).astype(jnp.float32)
            # padded lanes of A_w^T are zero -> m==0 there -> binm==0 there,
            # so num/den only see the real (height, width) region.
            num = jnp.sum(jax.nn.sigmoid(m) * binm)
            den = jnp.sum(binm)
            bin_ref[i] = binm
            score_ref[i] = jnp.full((1, score_ref.shape[2]),
                                    num / (den + 1e-6), jnp.float32)
    return kernel


def _pick_group(q, hm, out_h, wpad, budget_bytes=12 << 20):
    # largest divisor of q whose double-buffered outputs + intermediates fit
    # the VMEM budget, while keeping >= 2 parallel grid steps (v7x dual-TC).
    for g in sorted([d for d in range(1, q + 1) if q % d == 0], reverse=True):
        if q >= 4 and g > q // 2:
            continue
        if 4 * g * (2 * out_h * wpad + hm * wpad) <= budget_bytes:
            return g
    return 1


def fused_resize_score(masks_q, a_h, a_wt):
    """masks_q: (Q, hm, wm) quarter-res mask logits for one image.
    Returns (binary masks (Q, out_h, wpad), mask scores (Q,))."""
    q, hm, wm = masks_q.shape
    out_h, wpad = a_h.shape[0], a_wt.shape[1]
    g = _pick_group(q, hm, out_h, wpad)
    x = masks_q.reshape(q * hm, wm)               # contiguous, free in XLA
    binm, score = pl.pallas_call(
        _make_resize_score_kernel(g, hm),
        out_shape=(jax.ShapeDtypeStruct((q, out_h, wpad), jnp.float32),
                   jax.ShapeDtypeStruct((q, 1, 128), jnp.float32)),
        grid=(q // g,),
        in_specs=[
            pl.BlockSpec((g * hm, wm), lambda i: (i, 0)),
            pl.BlockSpec((out_h, hm), lambda i: (0, 0)),
            pl.BlockSpec((wm, wpad), lambda i: (0, 0)),
        ],
        out_specs=(pl.BlockSpec((g, out_h, wpad), lambda i: (i, 0, 0)),
                   pl.BlockSpec((g, 1, 128), lambda i: (i, 0, 0))),
        compiler_params=pltpu.CompilerParams(
            dimension_semantics=("parallel",)),
    )(x, jnp.asarray(a_h), jnp.asarray(a_wt))
    return binm, score[:, 0, 0]


# ----------------------- parameters (synthetic) ---------------------
def init_params(key):
    ks = jax.random.split(key, 5)
    d = EMBED_DIM
    ncb = NUM_CLASSES + 4
    w_cls = 0.02 * jax.random.normal(ks[2], (d, NUM_CLASSES), jnp.float32)
    w_box = 0.02 * jax.random.normal(ks[3], (d, 4), jnp.float32)
    w_mask = 0.02 * jax.random.normal(ks[4], (d, d), jnp.float32)
    # cls|box|mask-embed heads fused into ONE operand; the cls/box sub-slab is
    # zero-padded to a lane-aligned 128 columns.
    w_cbm = jnp.concatenate(
        [w_cls, w_box, jnp.zeros((d, CB_SLAB - ncb), jnp.float32), w_mask],
        axis=1)                                                   # (d, 128+d)
    a = (255.0 / PIXEL_STD).astype(np.float32)
    b = (-PIXEL_MEAN / PIXEL_STD).astype(np.float32)
    return {
        "norm_a": jnp.asarray(np.repeat(a[:, None], 128, axis=1)),  # (3,128)
        "norm_b": jnp.asarray(np.repeat(b[:, None], 128, axis=1)),  # (3,128)
        "w_patch": 0.02 * jax.random.normal(ks[0], (3 * PATCH * PATCH, d),
                                            jnp.float32),
        "b_patch": jnp.zeros((1, d), jnp.float32),
        "query_embed": 0.02 * jax.random.normal(ks[1], (NUM_QUERIES, d),
                                                jnp.float32),
        "w_cbm": w_cbm,
        "b_cbm": jnp.zeros((1, CB_SLAB + d), jnp.float32),
    }


# ----------------------------- glue ---------------------------------
def pad_and_normalize(batched_inputs, params):
    """ImageList.from_tensors + pixel normalization, batched in one kernel."""
    images = [x["image"].astype(jnp.float32) for x in batched_inputs]
    image_sizes = [(int(t.shape[-2]), int(t.shape[-1])) for t in images]
    max_h = max(s[0] for s in image_sizes)
    max_w = max(s[1] for s in image_sizes)
    s = SIZE_DIVISIBILITY
    if s > 1:
        max_h = (max_h + s - 1) // s * s
        max_w = (max_w + s - 1) // s * s
    b = len(images)
    padded = jnp.stack([
        jnp.pad(t, ((0, 0), (0, max_h - t.shape[-2]), (0, max_w - t.shape[-1])))
        for t in images])                                    # (B, 3, Hp, Wp)
    rows = (max_h * max_w) // 128                            # multiple of 8
    # static validity mask (padding is zero AFTER normalization, as in PyTorch)
    valid = np.zeros((b, 1, max_h, max_w), np.float32)
    for i, (h, w) in enumerate(image_sizes):
        valid[i, 0, :h, :w] = 1.0
    valid = jnp.asarray(valid.reshape(b, 1, rows, 128))
    flat = padded.reshape(b, 3, rows, 128)                   # vreg-dense tiles
    norm = normalize_images(flat, valid, params["norm_a"], params["norm_b"])
    return norm.reshape(b, 3, max_h, max_w), image_sizes


def synthetic_sem_seg_head(images_tensor, params):
    """Stand-in for backbone + MaskDINOHead producing pred_logits, pred_masks,
    pred_boxes — one fused Pallas kernel gridded over the batch."""
    b, c, h, w = images_tensor.shape
    p = PATCH
    hm, wm = h // p, w // p
    # TODO(synk): at real image sizes express this patchify via the head
    # kernel's BlockSpec/index_map instead of an XLA transpose pass.
    patches = images_tensor.reshape(b, c, hm, p, wm, p)
    patches = patches.transpose(0, 2, 4, 1, 3, 5).reshape(b, hm * wm,
                                                          c * p * p)
    logits, masks, boxes = fused_head(patches, params)
    masks = masks.reshape(b, NUM_QUERIES, hm, wm)
    return logits, masks, boxes


def box_postprocess(out_bbox, img_h, img_w):
    x_c, y_c, w, h = (out_bbox[:, 0], out_bbox[:, 1],
                      out_bbox[:, 2], out_bbox[:, 3])
    boxes = jnp.stack([x_c - 0.5 * w, y_c - 0.5 * h,
                       x_c + 0.5 * w, y_c + 0.5 * h], axis=-1)
    scale = jnp.array([img_w, img_h, img_w, img_h], dtype=out_bbox.dtype)
    return boxes * scale


def instance_inference(mask_cls, binm_all, mask_scores_all, mask_box_result,
                       image_size):
    scores = jax.nn.sigmoid(mask_cls)                                 # (Q, C)
    labels = jnp.tile(jnp.arange(NUM_CLASSES)[None, :],
                      (NUM_QUERIES, 1)).reshape(-1)
    flat = scores.reshape(-1)
    # TODO(synk): torch.topk(sorted=False) has no Pallas equivalent; done with
    # lax.top_k in plain JAX (same value set, sorted order).
    scores_per_image, topk_indices = jax.lax.top_k(flat, TEST_TOPK)
    labels_per_image = labels[topk_indices]
    query_idx = topk_indices // NUM_CLASSES
    # binary masks / mask scores were produced once per unique query inside the
    # fused resize+score kernel; just gather them here.
    return {
        "image_size": image_size,
        "pred_masks": binm_all[query_idx],                    # (K, h, w)
        "pred_boxes": mask_box_result[query_idx],             # (K, 4)
        "scores": scores_per_image * mask_scores_all[query_idx],
        "pred_classes": labels_per_image,
    }


def maskdino_swin_forward(batched_inputs, params):
    # 1-2) pixel normalization + ImageList padding (one batched Pallas kernel)
    images_tensor, image_sizes = pad_and_normalize(batched_inputs, params)

    # 3) backbone + sem_seg_head (synthetic, one fused Pallas kernel over B)
    mask_cls_results, mask_pred_results, mask_box_results = \
        synthetic_sem_seg_head(images_tensor, params)

    b, q, hm, wm = mask_pred_results.shape
    Hp, Wp = int(images_tensor.shape[-2]), int(images_tensor.shape[-1])
    new_size = (Hp, Wp)   # shape after the (now folded-away) first interpolate

    # 4-5) per-image: precomposed resize (quarter-res -> padded -> crop ->
    # (height,width)) fused with binarization + mask scoring in ONE kernel.
    # TODO(synk): images sharing (height,width) could be grouped into a single
    # batched pallas_call instead of per-image launches.
    processed_results = []
    for bi, (input_per_image, image_size) in enumerate(
            zip(batched_inputs, image_sizes)):
        height = int(input_per_image.get("height", image_size[0]))
        width = int(input_per_image.get("width", image_size[1]))
        a_h, a_wt = _composed_resize_matrices(hm, wm, Hp, Wp, image_size,
                                              height, width)
        binm_all, mask_scores_all = fused_resize_score(
            mask_pred_results[bi], a_h, a_wt)
        binm_all = binm_all[:, :, :width]          # drop lane padding (XLA)
        mask_cls_result = mask_cls_results[bi]
        mask_box_result = mask_box_results[bi]
        height_s = new_size[0] / image_size[0] * height
        width_s = new_size[1] / image_size[1] * width
        mask_box_result = box_postprocess(mask_box_result, height_s, width_s)
        instance_r = instance_inference(mask_cls_result, binm_all,
                                        mask_scores_all, mask_box_result,
                                        (height, width))
        processed_results.append({"instances": instance_r})
    return {"eval_result": processed_results}


# ------------------------------ main --------------------------------
if __name__ == "__main__":
    key = jax.random.PRNGKey(0)
    k_img0, k_img1, k_params = jax.random.split(key, 3)
    params = init_params(k_params)

    # images are float tensors in [0, 1] (forward multiplies by 255)
    batched_inputs = [
        {"image": jax.random.uniform(k_img0, (3, 32, 32), jnp.float32)},
        {"image": jax.random.uniform(k_img1, (3, 28, 24), jnp.float32)},
    ]

    out = maskdino_swin_forward(batched_inputs, params)

    for leaf in jax.tree_util.tree_leaves(out):
        if isinstance(leaf, jax.Array):
            leaf.block_until_ready()

    print("KERNEL_OK")
</pallas_src>

<mosaic_0001>
module attributes {stable_mosaic.version = 11 : i64} {
  func.func @_normalize_kernel(%arg0: i32, %arg1: i32, %arg2: memref<1x3x8x128xf32, #tpu.memory_space<vmem>>, %arg3: memref<3x128xf32, #tpu.memory_space<vmem>>, %arg4: memref<3x128xf32, #tpu.memory_space<vmem>>, %arg5: memref<1x1x8x128xf32, #tpu.memory_space<vmem>>, %arg6: memref<1x3x8x128xf32, #tpu.memory_space<vmem>>) attributes {dimension_semantics = [#tpu.dimension_semantics<parallel>, #tpu.dimension_semantics<parallel>], iteration_bounds = array<i64: 2, 1>, scalar_prefetch = 0 : i64, scratch_operands = 0 : i64, tpu.core_type = #tpu.core_type<tc>, window_params = [{transform_indices = @transform_0, window_bounds = array<i64: 1, 3, 8, 128>}, {pipeline_mode = #tpu.pipeline_mode<synchronous>, transform_indices = @transform_1, window_bounds = array<i64: 3, 128>}, {pipeline_mode = #tpu.pipeline_mode<synchronous>, transform_indices = @transform_2, window_bounds = array<i64: 3, 128>}, {transform_indices = @transform_3, window_bounds = array<i64: 1, 1, 8, 128>}, {transform_indices = @transform_4, window_bounds = array<i64: 1, 3, 8, 128>}]} {
    %c0 = arith.constant 0 : index
    %c0_0 = arith.constant 0 : index
    %c0_1 = arith.constant 0 : index
    %c0_2 = arith.constant 0 : index
    %0 = vector.load %arg5[%c0, %c0_0, %c0_1, %c0_2] : memref<1x1x8x128xf32, #tpu.memory_space<vmem>>, vector<1x1x8x128xf32>
    %1 = vector.shape_cast %0 : vector<1x1x8x128xf32> to vector<8x128xf32>
    %c0_3 = arith.constant 0 : index
    %c0_4 = arith.constant 0 : index
    %c0_5 = arith.constant 0 : index
    %c0_6 = arith.constant 0 : index
    %2 = vector.load %arg2[%c0_3, %c0_4, %c0_5, %c0_6] : memref<1x3x8x128xf32, #tpu.memory_space<vmem>>, vector<1x1x8x128xf32>
    %3 = vector.shape_cast %2 : vector<1x1x8x128xf32> to vector<8x128xf32>
    %c0_7 = arith.constant 0 : index
    %c0_8 = arith.constant 0 : index
    %4 = vector.load %arg3[%c0_7, %c0_8] : memref<3x128xf32, #tpu.memory_space<vmem>>, vector<1x128xf32>
    %5 = vector.shape_cast %4 : vector<1x128xf32> to vector<128xf32>
    %6 = vector.shape_cast %5 : vector<128xf32> to vector<1x128xf32>
    %7 = vector.broadcast %6 : vector<1x128xf32> to vector<8x128xf32>
    %8 = arith.mulf %3, %7 : vector<8x128xf32>
    %c0_9 = arith.constant 0 : index
    %c0_10 = arith.constant 0 : index
    %9 = vector.load %arg4[%c0_9, %c0_10] : memref<3x128xf32, #tpu.memory_space<vmem>>, vector<1x128xf32>
    %10 = vector.shape_cast %9 : vector<1x128xf32> to vector<128xf32>
    %11 = vector.shape_cast %10 : vector<128xf32> to vector<1x128xf32>
    %12 = vector.broadcast %11 : vector<1x128xf32> to vector<8x128xf32>
    %13 = arith.addf %8, %12 : vector<8x128xf32>
    %14 = arith.mulf %13, %1 : vector<8x128xf32>
    %c0_11 = arith.constant 0 : index
    %c0_12 = arith.constant 0 : index
    %c0_13 = arith.constant 0 : index
    %c0_14 = arith.constant 0 : index
    %15 = vector.load %arg6[%c0_11, %c0_12, %c0_13, %c0_14] : memref<1x3x8x128xf32, #tpu.memory_space<vmem>>, vector<1x1x8x128xf32>
    %16 = vector.shape_cast %15 : vector<1x1x8x128xf32> to vector<8x128xf32>
    %17 = vector.shape_cast %14 : vector<8x128xf32> to vector<1x1x8x128xf32>
    tpu.vector_store %arg6[%c0_11, %c0_12, %c0_13, %c0_14], %17 {strides = array<i32>} : memref<1x3x8x128xf32, #tpu.memory_space<vmem>>, vector<1x1x8x128xf32>,
    %c0_15 = arith.constant 0 : index
    %c1 = arith.constant 1 : index
    %c0_16 = arith.constant 0 : index
    %c0_17 = arith.constant 0 : index
    %18 = vector.load %arg2[%c0_15, %c1, %c0_16, %c0_17] : memref<1x3x8x128xf32, #tpu.memory_space<vmem>>, vector<1x1x8x128xf32>
    %19 = vector.shape_cast %18 : vector<1x1x8x128xf32> to vector<8x128xf32>
    %c1_18 = arith.constant 1 : index
    %c0_19 = arith.constant 0 : index
    %20 = vector.load %arg3[%c1_18, %c0_19] : memref<3x128xf32, #tpu.memory_space<vmem>>, vector<1x128xf32>
    %21 = vector.shape_cast %20 : vector<1x128xf32> to vector<128xf32>
    %22 = vector.shape_cast %21 : vector<128xf32> to vector<1x128xf32>
    %23 = vector.broadcast %22 : vector<1x128xf32> to vector<8x128xf32>
    %24 = arith.mulf %19, %23 : vector<8x128xf32>
    %c1_20 = arith.constant 1 : index
    %c0_21 = arith.constant 0 : index
    %25 = vector.load %arg4[%c1_20, %c0_21] : memref<3x128xf32, #tpu.memory_space<vmem>>, vector<1x128xf32>
    %26 = vector.shape_cast %25 : vector<1x128xf32> to vector<128xf32>
    %27 = vector.shape_cast %26 : vector<128xf32> to vector<1x128xf32>
    %28 = vector.broadcast %27 : vector<1x128xf32> to vector<8x128xf32>
    %29 = arith.addf %24, %28 : vector<8x128xf32>
    %30 = arith.mulf %29, %1 : vector<8x128xf32>
    %c0_22 = arith.constant 0 : index
    %c1_23 = arith.constant 1 : index
    %c0_24 = arith.constant 0 : index
    %c0_25 = arith.constant 0 : index
    %31 = vector.load %arg6[%c0_22, %c1_23, %c0_24, %c0_25] : memref<1x3x8x128xf32, #tpu.memory_space<vmem>>, vector<1x1x8x128xf32>
    %32 = vector.shape_cast %31 : vector<1x1x8x128xf32> to vector<8x128xf32>
    %33 = vector.shape_cast %30 : vector<8x128xf32> to vector<1x1x8x128xf32>
    tpu.vector_store %arg6[%c0_22, %c1_23, %c0_24, %c0_25], %33 {strides = array<i32>} : memref<1x3x8x128xf32, #tpu.memory_space<vmem>>, vector<1x1x8x128xf32>,
    %c0_26 = arith.constant 0 : index
    %c2 = arith.constant 2 : index
    %c0_27 = arith.constant 0 : index
    %c0_28 = arith.constant 0 : index
    %34 = vector.load %arg2[%c0_26, %c2, %c0_27, %c0_28] : memref<1x3x8x128xf32, #tpu.memory_space<vmem>>, vector<1x1x8x128xf32>
    %35 = vector.shape_cast %34 : vector<1x1x8x128xf32> to vector<8x128xf32>
    %c2_29 = arith.constant 2 : index
    %c0_30 = arith.constant 0 : index
    %36 = vector.load %arg3[%c2_29, %c0_30] : memref<3x128xf32, #tpu.memory_space<vmem>>, vector<1x128xf32>
    %37 = vector.shape_cast %36 : vector<1x128xf32> to vector<128xf32>
    %38 = vector.shape_cast %37 : vector<128xf32> to vector<1x128xf32>
    %39 = vector.broadcast %38 : vector<1x128xf32> to vector<8x128xf32>
    %40 = arith.mulf %35, %39 : vector<8x128xf32>
    %c2_31 = arith.constant 2 : index
    %c0_32 = arith.constant 0 : index
    %41 = vector.load %arg4[%c2_31, %c0_32] : memref<3x128xf32, #tpu.memory_space<vmem>>, vector<1x128xf32>
    %42 = vector.shape_cast %41 : vector<1x128xf32> to vector<128xf32>
    %43 = vector.shape_cast %42 : vector<128xf32> to vector<1x128xf32>
    %44 = vector.broadcast %43 : vector<1x128xf32> to vector<8x128xf32>
    %45 = arith.addf %40, %44 : vector<8x128xf32>
    %46 = arith.mulf %45, %1 : vector<8x128xf32>
    %c0_33 = arith.constant 0 : index
    %c2_34 = arith.constant 2 : index
    %c0_35 = arith.constant 0 : index
    %c0_36 = arith.constant 0 : index
    %47 = vector.load %arg6[%c0_33, %c2_34, %c0_35, %c0_36] : memref<1x3x8x128xf32, #tpu.memory_space<vmem>>, vector<1x1x8x128xf32>
    %48 = vector.shape_cast %47 : vector<1x1x8x128xf32> to vector<8x128xf32>
    %49 = vector.shape_cast %46 : vector<8x128xf32> to vector<1x1x8x128xf32>
    tpu.vector_store %arg6[%c0_33, %c2_34, %c0_35, %c0_36], %49 {strides = array<i32>} : memref<1x3x8x128xf32, #tpu.memory_space<vmem>>, vector<1x1x8x128xf32>,
    return
  }
  func.func @transform_0(%arg0: i32, %arg1: i32) -> (i32, i32, i32, i32) {
    %c0_i32 = arith.constant 0 : i32
    %c0_i32_0 = arith.constant 0 : i32
    %c0_i32_1 = arith.constant 0 : i32
    return %arg0, %c0_i32, %arg1, %c0_i32_0 : i32, i32, i32, i32
  }
  func.func @transform_1(%arg0: i32, %arg1: i32) -> (i32, i32) {
    %c0_i32 = arith.constant 0 : i32
    %c0_i32_0 = arith.constant 0 : i32
    %c0_i32_1 = arith.constant 0 : i32
    return %c0_i32, %c0_i32_0 : i32, i32
  }
  func.func @transform_2(%arg0: i32, %arg1: i32) -> (i32, i32) {
    %c0_i32 = arith.constant 0 : i32
    %c0_i32_0 = arith.constant 0 : i32
    %c0_i32_1 = arith.constant 0 : i32
    return %c0_i32, %c0_i32_0 : i32, i32
  }
  func.func @transform_3(%arg0: i32, %arg1: i32) -> (i32, i32, i32, i32) {
    %c0_i32 = arith.constant 0 : i32
    %c0_i32_0 = arith.constant 0 : i32
    %c0_i32_1 = arith.constant 0 : i32
    return %arg0, %c0_i32, %arg1, %c0_i32_0 : i32, i32, i32, i32
  }
  func.func @transform_4(%arg0: i32, %arg1: i32) -> (i32, i32, i32, i32) {
    %c0_i32 = arith.constant 0 : i32
    %c0_i32_0 = arith.constant 0 : i32
    %c0_i32_1 = arith.constant 0 : i32
    return %arg0, %c0_i32, %arg1, %c0_i32_0 : i32, i32, i32, i32
  }
}

</mosaic_0001>

<llo_original>
// kernel: tpu_custom_call.1
$region0: #{tpu_custom_call.1}
  #allocation0 [shape = 'u32[]', space=smem, size = 0x4, offset = 0x4, fixed_abs, tag = 'smem constant byte address 0x4 - core index']
  #allocation1 [shape = 'u32[72,128]{1,0:T(1,128)}', space=vmem, size = 0x9000, scoped, tag = 'internal scratch']
  %s0 = inlined_call_operand.hbm [shape: f32[2,3,8,128], index: 0, kind: input, shape index: {}]
  %s1 = inlined_call_operand.hbm [shape: f32[3,128], index: 1, kind: input, shape index: {}]
  %s2 = inlined_call_operand.hbm [shape: f32[3,128], index: 2, kind: input, shape index: {}]
  %s3 = inlined_call_operand.hbm [shape: f32[2,1,8,128], index: 3, kind: input, shape index: {}]
  %s4 = inlined_call_operand.hbm [shape: f32[2,3,8,128], index: 4, kind: output, shape index: {}]
  %s5 = sld [smem:[#allocation0]]
  $region65: #{tpu_custom_call.1} parent=0
    _
  %s7 = ssub.s32 1, %s5
  %s8 = scalar_select 0, %s7, %s5
  $region1: #{tpu_custom_call.1} parent=0
    #allocation2 [shape = 'u8[24576]{0}', space=vmem, size = 0x6000, scoped, tag = 'input window, operand 0']
    #allocation3 [shape = 's32[2]{0}', space=sflag, size = 0x8, scoped, tag = 'scoped memory for tpu_custom_call.1']
    #allocation4 [shape = 's32[2]{0}', space=sflag, size = 0x8, scoped, tag = 'scoped memory for tpu_custom_call.1']
    #allocation5 [shape = 'u8[2048]{0}', space=vmem, size = 0x800, scoped, tag = 'input window, operand 1, single buffered']
    #allocation6 [shape = 's32[1]{0}', space=sflag, size = 0x4, scoped, tag = 'scoped memory for tpu_custom_call.1']
    #allocation7 [shape = 'u8[2048]{0}', space=vmem, size = 0x800, scoped, tag = 'input window, operand 2, single buffered']
    #allocation8 [shape = 'u8[8192]{0}', space=vmem, size = 0x2000, scoped, tag = 'input window, operand 3']
    #allocation9 [shape = 's32[2]{0}', space=sflag, size = 0x8, scoped, tag = 'scoped memory for tpu_custom_call.1']
    #allocation10 [shape = 'u8[24576]{0}', space=vmem, size = 0x6000, scoped, tag = 'output window, operand 0']
    %9 = vsyncpa [#allocation3], 0
    %s10 = scalar_lea.sflag [#allocation3], 1
    %11 = vsyncpa %s10, 0
    %12 = vsyncpa [#allocation6], 0
    %13 = vsyncpa [#allocation9], 0
    %s14 = scalar_lea.sflag [#allocation9], 1
    %15 = vsyncpa %s14, 0
    %16 = vsyncpa [#allocation4], 0
    %s17 = scalar_lea.sflag [#allocation4], 1
    %18 = vsyncpa %s17, 0
    loop: start=0, step=1, limit=4
    $region2: #{tpu_custom_call.1} parent=1 // loop_pre_header
      _
    $region3: #{tpu_custom_call.1} parent=1 // loop_header
      %s20 = sphi 0, %s24
      %p21 = scmp.ge.s32.totalorder %s20, 4
      %s27 = sphi 0, %s39
      %s28 = sphi 0, %s35
      %s29 = sphi 0, %s27
      %s30 = sphi 0, %s28
      %s31 = sphi 0, %s29
      %s32 = sphi 0, %s30
      %s44 = sphi 0, %s46
      %s47 = sphi 0, %s44
      %s48 = sphi 0, %s47
      %s64 = sphi 0, %s48
      %s68 = sphi 0, %s68
      %s70 = sphi 0, %s68
      %s71 = sphi 0, %s70
      %s85 = sphi 0, %s71
      %s89 = sphi 0, %s89
      %s91 = sphi 0, %s89
      %s92 = sphi 0, %s91
      %s106 = sphi 0, %s92
      %s114 = sphi 0, %s116
      %s117 = sphi 0, %s114
      %s118 = sphi 0, %s117
      %s134 = sphi 0, %s118
      %s142 = sphi 0, %s144
      %s145 = sphi 0, %s142
      %s146 = sphi 0, %s145
      %s162 = sphi 0, %s146
    $region4: #{tpu_custom_call.1} parent=1 // loop_header_branch
      %23 = sbr.rel (%p21) target = $region8
    $region5: #{tpu_custom_call.1} parent=1 // loop_body
      %s25 = ssub.s32 %s20, 1
      %s26 = ssub.s32 %s20, 2
      %s33 = sadd.s32 1, %s28
      %p34 = scmp.ge.s32.totalorder %s33, 1
      %s35 = scalar_select %p34, 0, %s33
      %s36 = sadd.s32 1, %s27
      %s37 = scalar_select %p34, %s36, %s27
      %p38 = scmp.ge.s32.totalorder %s37, 2
      %s39 = scalar_select %p38, 0, %s37
      %s40 = ssub.s32 %s27, %s39
      %s41 = ssub.s32 %s28, %s35
      %s42 = sor.u32 %s40, %s41
      %p43 = scmp.eq.s32.totalorder %s42, 0
      %s45 = sadd.s32 %s44, 1
      %s46 = scalar_select %p43, %s44, %s45
      %p49 = pneg %p43
      %p50 = scmp.eq.s32.totalorder %s20, 1
      %p51 = por %p49, %p50
      %p52 = scmp.ne.s32.totalorder %s44, %s47
      %p53 = scmp.eq.s32.totalorder %s20, 0
      %p54 = por %p52, %p53
      %p55 = scmp.ne.s32.totalorder %s44, %s47
      %p56 = scmp.eq.s32.totalorder %s25, 1
      %p57 = por %p55, %p56
      %p58 = scmp.ne.s32.totalorder %s47, %s48
      %p59 = scmp.eq.s32.totalorder %s25, 0
      %p60 = por %p58, %p59
      %p61 = scmp.ne.s32.totalorder %s47, %s48
      %p62 = scmp.eq.s32.totalorder %s26, 1
      %p63 = por %p61, %p62
      %p65 = scmp.ne.s32.totalorder %s48, %s64
      %p66 = scmp.eq.s32.totalorder %s26, 0
      %p67 = por %p65, %p66
      %s69 = sadd.s32 %s68, 1
      %p72 = scmp.eq.s32.totalorder %s20, 1
      %p73 = scmp.ne.s32.totalorder %s68, %s70
      %p74 = scmp.eq.s32.totalorder %s20, 0
      %p75 = por %p73, %p74
      %p76 = scmp.ne.s32.totalorder %s68, %s70
      %p77 = scmp.eq.s32.totalorder %s25, 1
      %p78 = por %p76, %p77
      %p79 = scmp.ne.s32.totalorder %s70, %s71
      %p80 = scmp.eq.s32.totalorder %s25, 0
      %p81 = por %p79, %p80
      %p82 = scmp.ne.s32.totalorder %s70, %s71
      %p83 = scmp.eq.s32.totalorder %s26, 1
      %p84 = por %p82, %p83
      %p86 = scmp.ne.s32.totalorder %s71, %s85
      %p87 = scmp.eq.s32.totalorder %s26, 0
      %p88 = por %p86, %p87
      %s90 = sadd.s32 %s89, 1
      %p93 = scmp.eq.s32.totalorder %s20, 1
      %p94 = scmp.ne.s32.totalorder %s89, %s91
      %p95 = scmp.eq.s32.totalorder %s20, 0
      %p96 = por %p94, %p95
      %p97 = scmp.ne.s32.totalorder %s89, %s91
      %p98 = scmp.eq.s32.totalorder %s25, 1
      %p99 = por %p97, %p98
      %p100 = scmp.ne.s32.totalorder %s91, %s92
      %p101 = scmp.eq.s32.totalorder %s25, 0
      %p102 = por %p100, %p101
      %p103 = scmp.ne.s32.totalorder %s91, %s92
      %p104 = scmp.eq.s32.totalorder %s26, 1
      %p105 = por %p103, %p104
      %p107 = scmp.ne.s32.totalorder %s92, %s106
      %p108 = scmp.eq.s32.totalorder %s26, 0
      %p109 = por %p107, %p108
      %s110 = ssub.s32 %s27, %s39
      %s111 = ssub.s32 %s28, %s35
      %s112 = sor.u32 %s110, %s111
      %p113 = scmp.eq.s32.totalorder %s112, 0
      %s115 = sadd.s32 %s114, 1
      %s116 = scalar_select %p113, %s114, %s115
      %p119 = pneg %p113
      %p120 = scmp.eq.s32.totalorder %s20, 1
      %p121 = por %p119, %p120
      %p122 = scmp.ne.s32.totalorder %s114, %s117
      %p123 = scmp.eq.s32.totalorder %s20, 0
      %p124 = por %p122, %p123
      %p125 = scmp.ne.s32.totalorder %s114, %s117
      %p126 = scmp.eq.s32.totalorder %s25, 1
      %p127 = por %p125, %p126
      %p128 = scmp.ne.s32.totalorder %s117, %s118
      %p129 = scmp.eq.s32.totalorder %s25, 0
      %p130 = por %p128, %p129
      %p131 = scmp.ne.s32.totalorder %s117, %s118
      %p132 = scmp.eq.s32.totalorder %s26, 1
      %p133 = por %p131, %p132
      %p135 = scmp.ne.s32.totalorder %s118, %s134
      %p136 = scmp.eq.s32.totalorder %s26, 0
      %p137 = por %p135, %p136
      %s138 = ssub.s32 %s27, %s39
      %s139 = ssub.s32 %s28, %s35
      %s140 = sor.u32 %s138, %s139
      %p141 = scmp.eq.s32.totalorder %s140, 0
      %s143 = sadd.s32 %s142, 1
      %s144 = scalar_select %p141, %s142, %s143
      %p147 = pneg %p141
      %p148 = scmp.eq.s32.totalorder %s20, 1
      %p149 = por %p147, %p148
      %p150 = scmp.ne.s32.totalorder %s142, %s145
      %p151 = scmp.eq.s32.totalorder %s20, 0
      %p152 = por %p150, %p151
      %p153 = scmp.ne.s32.totalorder %s142, %s145
      %p154 = scmp.eq.s32.totalorder %s25, 1
      %p155 = por %p153, %p154
      %p156 = scmp.ne.s32.totalorder %s145, %s146
      %p157 = scmp.eq.s32.totalorder %s25, 0
      %p158 = por %p156, %p157
      %p159 = scmp.ne.s32.totalorder %s145, %s146
      %p160 = scmp.eq.s32.totalorder %s26, 1
      %p161 = por %p159, %p160
      %p163 = scmp.ne.s32.totalorder %s146, %s162
      %p164 = scmp.eq.s32.totalorder %s26, 0
      %p165 = por %p163, %p164
      %p166 = scmp.le.s32.totalorder 1, %s20
      %p167 = scmp.lt.s32.totalorder %s20, 3
      %p168 = pnand %p166, %p167
      %p169 = pneg %p168
      // Predicated region
      $region9: #{tpu_custom_call.1} parent=5 // pred_check
        _
      $region10: #{tpu_custom_call.1} parent=5 // pred_check_branch
        %171 = sbr.rel (%p168) target = $region12
      $region11: #{tpu_custom_call.1} parent=5 // pred_region
        %s172 = ssub.s32 %s20, 1
        // Predicated region
        $region13: #{tpu_custom_call.1} parent=11 // pred_check
          %p173 = pneg %p81
        $region14: #{tpu_custom_call.1} parent=11 // pred_check_branch
          %175 = sbr.rel (%p173) target = $region16
        $region15: #{tpu_custom_call.1} parent=11 // pred_region
          %177 = vsyncadd [#allocation6], 0
          %s179 = sshll.u32 %s1, 4
          %s180 = int_to_ptr.hbm [resolvable:$true] %s179
          %s181 = sshll.u32 [#allocation5], 4
          %s182 = int_to_ptr.vmem [resolvable:$true] %s181
          %184 = dma.hbm_to_vmem [thread:$0]  %s180, 64, %s182, [#allocation6]
        $region16: #{tpu_custom_call.1} parent=11 // pred_fallthru
          _
        // Predicated region
        $region17: #{tpu_custom_call.1} parent=11 // pred_check
          %p185 = pneg %p102
        $region18: #{tpu_custom_call.1} parent=11 // pred_check_branch
          %187 = sbr.rel (%p185) target = $region20
        $region19: #{tpu_custom_call.1} parent=11 // pred_region
          %189 = vsyncadd [#allocation6], 0
          %s191 = sshll.u32 %s2, 4
          %s192 = int_to_ptr.hbm [resolvable:$true] %s191
          %s193 = sshll.u32 [#allocation7], 4
          %s194 = int_to_ptr.vmem [resolvable:$true] %s193
          %196 = dma.hbm_to_vmem [thread:$0]  %s192, 64, %s194, [#allocation6]
        $region20: #{tpu_custom_call.1} parent=11 // pred_fallthru
          _
      $region12: #{tpu_custom_call.1} parent=5 // pred_fallthru
        _
      %p197 = scmp.lt.s32.totalorder %s20, 2
      // Predicated region
      $region21: #{tpu_custom_call.1} parent=5 // pred_check
        %p198 = pneg %p197
      $region22: #{tpu_custom_call.1} parent=5 // pred_check_branch
        %200 = sbr.rel (%p198) target = $region24
      $region23: #{tpu_custom_call.1} parent=5 // pred_region
        // Predicated region
        $region25: #{tpu_custom_call.1} parent=23 // pred_check
          %p201 = pneg %p54
        $region26: #{tpu_custom_call.1} parent=23 // pred_check_branch
          %203 = sbr.rel (%p201) target = $region28
        $region27: #{tpu_custom_call.1} parent=23 // pred_region
          %s204 = sand.u32 %s44, 1
          %s205 = scalar_lea.sflag [#allocation3], %s204
          %s206 = sand.u32 %s44, 1
          %s207 = smul.addr %s206, 24
          %s208 = scalar_lea.vmem [#allocation2], %s207
          %210 = vsyncadd %s205, 0
          %s211 = smul.addr %s27, 3
          %s212 = sadd.s32 %s28, %s211
          %s213 = smul.addr %s212, 8
          %s214 = scalar_lea.hbm %s0, %s213
          %s215 = sshll.u32 %s214, 4
          %s216 = int_to_ptr.hbm [resolvable:$true] %s215
          %s217 = sshll.u32 %s208, 4
          %s218 = int_to_ptr.vmem [resolvable:$true] %s217
          %223 = dma.hbm_to_vmem [thread:$0]  %s216, 384, %s218, %s205, 128, 128, 8
        $region28: #{tpu_custom_call.1} parent=23 // pred_fallthru
          _
        // Predicated region
        $region29: #{tpu_custom_call.1} parent=23 // pred_check
          %p224 = pneg %p124
        $region30: #{tpu_custom_call.1} parent=23 // pred_check_branch
          %226 = sbr.rel (%p224) target = $region32
        $region31: #{tpu_custom_call.1} parent=23 // pred_region
          %s227 = sand.u32 %s114, 1
          %s228 = scalar_lea.sflag [#allocation9], %s227
          %s229 = sand.u32 %s114, 1
          %s230 = smul.addr %s229, 8
          %s231 = scalar_lea.vmem [#allocation8], %s230
          %233 = vsyncadd %s228, 0
          %s234 = sadd.s32 %s28, %s27
          %s235 = smul.addr %s234, 8
          %s236 = scalar_lea.hbm %s3, %s235
          %s238 = sshll.u32 %s236, 4
          %s239 = int_to_ptr.hbm [resolvable:$true] %s238
          %s240 = sshll.u32 %s231, 4
          %s241 = int_to_ptr.vmem [resolvable:$true] %s240
          %243 = dma.hbm_to_vmem [thread:$0]  %s239, 128, %s241, %s228
        $region32: #{tpu_custom_call.1} parent=23 // pred_fallthru
          _
      $region24: #{tpu_custom_call.1} parent=5 // pred_fallthru
        _
      %p244 = scmp.le.s32.totalorder 1, %s20
      %p245 = scmp.lt.s32.totalorder %s20, 3
      %p246 = pnand %p244, %p245
      %p247 = pneg %p246
      // Predicated region
      $region33: #{tpu_custom_call.1} parent=5 // pred_check
        _
      $region34: #{tpu_custom_call.1} parent=5 // pred_check_branch
        %249 = sbr.rel (%p246) target = $region36
      $region35: #{tpu_custom_call.1} parent=5 // pred_region
        %s250 = ssub.s32 %s20, 1
        %s251 = sand.u32 %s47, 1
        %s252 = scalar_lea.sflag [#allocation3], %s251
        %s253 = sand.u32 %s47, 1
        %s254 = smul.addr %s253, 24
        %s255 = scalar_lea.vmem [#allocation2], %s254
        // Predicated region
        $region37: #{tpu_custom_call.1} parent=35 // pred_check
          %p256 = pneg %p60
        $region38: #{tpu_custom_call.1} parent=35 // pred_check_branch
          %258 = sbr.rel (%p256) target = $region40
        $region39: #{tpu_custom_call.1} parent=35 // pred_region
          %260 = dma.done %s252, 384
        $region40: #{tpu_custom_call.1} parent=35 // pred_fallthru
          _
        // Predicated region
        $region41: #{tpu_custom_call.1} parent=35 // pred_check
          %p261 = pneg %p81
        $region42: #{tpu_custom_call.1} parent=35 // pred_check_branch
          %263 = sbr.rel (%p261) target = $region44
        $region43: #{tpu_custom_call.1} parent=35 // pred_region
          %265 = dma.done [#allocation6], 64
        $region44: #{tpu_custom_call.1} parent=35 // pred_fallthru
          _
        // Predicated region
        $region45: #{tpu_custom_call.1} parent=35 // pred_check
          %p266 = pneg %p102
        $region46: #{tpu_custom_call.1} parent=35 // pred_check_branch
          %268 = sbr.rel (%p266) target = $region48
        $region47: #{tpu_custom_call.1} parent=35 // pred_region
          %270 = dma.done [#allocation6], 64
        $region48: #{tpu_custom_call.1} parent=35 // pred_fallthru
          _
        %s271 = sand.u32 %s117, 1
        %s272 = scalar_lea.sflag [#allocation9], %s271
        %s273 = sand.u32 %s117, 1
        %s274 = smul.addr %s273, 8
        %s275 = scalar_lea.vmem [#allocation8], %s274
        // Predicated region
        $region49: #{tpu_custom_call.1} parent=35 // pred_check
          %p276 = pneg %p130
        $region50: #{tpu_custom_call.1} parent=35 // pred_check_branch
          %278 = sbr.rel (%p276) target = $region52
        $region51: #{tpu_custom_call.1} parent=35 // pred_region
          %280 = dma.done %s272, 128
        $region52: #{tpu_custom_call.1} parent=35 // pred_fallthru
          _
        %s281 = sand.u32 %s47, 1
        %s282 = scalar_lea.sflag [#allocation3], %s281
        %s283 = sand.u32 %s47, 1
        %s284 = smul.addr %s283, 24
        %s285 = scalar_lea.vmem [#allocation2], %s284
        %p286 = pneg %p60
        %p287 = pneg %p57
        %p288 = pneg %p81
        %p289 = pneg %p78
        %p290 = pneg %p102
        %p291 = pneg %p99
        %s292 = sand.u32 %s117, 1
        %s293 = scalar_lea.sflag [#allocation9], %s292
        %s294 = sand.u32 %s117, 1
        %s295 = smul.addr %s294, 8
        %s296 = scalar_lea.vmem [#allocation8], %s295
        %p297 = pneg %p130
        %p298 = pneg %p127
        %p299 = pneg %p158
        %p300 = pneg %p155
        %s301 = sand.u32 %s145, 1
        %s302 = scalar_lea.sflag [#allocation4], %s301
        %s303 = sand.u32 %s145, 1
        %s304 = smul.addr %s303, 24
        %s305 = scalar_lea.vmem [#allocation10], %s304
        %v306 = vld [vmem:[%s275] sm:$0xff]
        %v307 = vld [vmem:[%s255] sm:$0xff]
        %v308 = vld [vmem:[#allocation5] sm:$0x1]
        %v309 = vperm.slane %v308, 0
        %v310 = vmul.f32 %v307, %v309
        %v311 = vld [vmem:[#allocation7] sm:$0x1]
        %v312 = vperm.slane %v311, 0
        %v313 = vadd.f32 %v310, %v312
        %v314 = vmul.f32 %v313, %v306
        %315 = vst [vmem:[%s305] sm:$0xff] %v314
        %s316 = scalar_lea.vmem %s255, 8 [#allocation2]
        %v317 = vld [vmem:[%s316] sm:$0xff]
        %v318 = vld [vmem:[#allocation5 + $0x1] sm:$0x1]
        %v319 = vperm.slane %v318, 0
        %v320 = vmul.f32 %v317, %v319
        %v321 = vld [vmem:[#allocation7 + $0x1] sm:$0x1]
        %v322 = vperm.slane %v321, 0
        %v323 = vadd.f32 %v320, %v322
        %v324 = vmul.f32 %v323, %v306
        %s325 = scalar_lea.vmem %s305, 8 [#allocation10]
        %326 = vst [vmem:[%s325] sm:$0xff] %v324
        %s327 = scalar_lea.vmem %s255, 16 [#allocation2]
        %v328 = vld [vmem:[%s327] sm:$0xff]
        %v329 = vld [vmem:[#allocation5 + $0x2] sm:$0x1]
        %v330 = vperm.slane %v329, 0
        %v331 = vmul.f32 %v328, %v330
        %v332 = vld [vmem:[#allocation7 + $0x2] sm:$0x1]
        %v333 = vperm.slane %v332, 0
        %v334 = vadd.f32 %v331, %v333
        %v335 = vmul.f32 %v334, %v306
        %s336 = scalar_lea.vmem %s305, 16 [#allocation10]
        %337 = vst [vmem:[%s336] sm:$0xff] %v335
        %s338 = sand.u32 %s145, 1
        %s339 = scalar_lea.sflag [#allocation4], %s338
        %s340 = sand.u32 %s145, 1
        %s341 = smul.addr %s340, 24
        %s342 = scalar_lea.vmem [#allocation10], %s341
        // Predicated region
        $region53: #{tpu_custom_call.1} parent=35 // pred_check
          %p343 = pneg %p155
        $region54: #{tpu_custom_call.1} parent=35 // pred_check_branch
          %345 = sbr.rel (%p343) target = $region56
        $region55: #{tpu_custom_call.1} parent=35 // pred_region
          %347 = vsyncadd %s339, 0
          %s348 = smul.addr %s29, 3
          %s349 = sadd.s32 %s30, %s348
          %s350 = smul.addr %s349, 8
          %s351 = scalar_lea.hbm %s4, %s350
          %s352 = sshll.u32 %s342, 4
          %s353 = int_to_ptr.vmem [resolvable:$true] %s352
          %s354 = sshll.u32 %s351, 4
          %s355 = int_to_ptr.hbm [resolvable:$true] %s354
          %360 = dma.vmem_to_hbm [thread:$0]  %s353, 384, %s355, %s339, 128, 128, 8
        $region56: #{tpu_custom_call.1} parent=35 // pred_fallthru
          _
      $region36: #{tpu_custom_call.1} parent=5 // pred_fallthru
        _
      %p361 = scmp.le.s32.totalorder 2, %s20
      // Predicated region
      $region57: #{tpu_custom_call.1} parent=5 // pred_check
        %p362 = pneg %p361
      $region58: #{tpu_custom_call.1} parent=5 // pred_check_branch
        %364 = sbr.rel (%p362) target = $region60
      $region59: #{tpu_custom_call.1} parent=5 // pred_region
        %s365 = ssub.s32 %s20, 2
        // Predicated region
        $region61: #{tpu_custom_call.1} parent=59 // pred_check
          %p366 = pneg %p161
        $region62: #{tpu_custom_call.1} parent=59 // pred_check_branch
          %368 = sbr.rel (%p366) target = $region64
        $region63: #{tpu_custom_call.1} parent=59 // pred_region
          %s369 = sand.u32 %s146, 1
          %s370 = scalar_lea.sflag [#allocation4], %s369
          %s371 = sand.u32 %s146, 1
          %s372 = smul.addr %s371, 24
          %s373 = scalar_lea.vmem [#allocation10], %s372
          %375 = dma.done %s370, 384
        $region64: #{tpu_custom_call.1} parent=59 // pred_fallthru
          _
      $region60: #{tpu_custom_call.1} parent=5 // pred_fallthru
        _
    $region6: #{tpu_custom_call.1} parent=1 // loop_footer
      %s24 = sadd.s32 1, %s20
    $region7: #{tpu_custom_call.1} parent=1 // loop_footer_branch
      %19 = sbr.rel target = $region3
    $region8: #{tpu_custom_call.1} parent=1 // loop_exit
      _
    %376 = vsyncpa [#allocation3], 1
    %s377 = scalar_lea.sflag [#allocation3], 1
    %378 = vsyncpa %s377, 1
    %379 = vsyncpa [#allocation6], 1
    %380 = vsyncpa [#allocation9], 1
    %s381 = scalar_lea.sflag [#allocation9], 1
    %382 = vsyncpa %s381, 1
    %383 = vsyncpa [#allocation4], 1
    %s384 = scalar_lea.sflag [#allocation4], 1
    %385 = vsyncpa %s384, 1

</llo_original>
